<compile_context>
chip_gen: v6e
topology: v6e:2x2x1
jax: 0.10.0
libtpu: 0.0.40
codegen_flags: <defaults>
</compile_context>

<pallas_src>
import functools

import jax
import jax.numpy as jnp
import numpy as np
from jax.experimental import pallas as pl
from jax.experimental.pallas import tpu as pltpu


# ---------------------------------------------------------------------------
# Positional-encoding table construction (host-side, deterministic glue;
# built once at module init in PyTorch, so it is not part of the hot kernel).
# ---------------------------------------------------------------------------
def get_positional_encoding_table(number_of_tokens: int,
                                  size_of_token_embedding: int) -> np.ndarray:
    """Replicates get_positional_encoding_tensor from the PyTorch module."""
    j = np.arange(size_of_token_embedding, dtype=np.float64)
    i = np.arange(number_of_tokens, dtype=np.float64)[:, None]
    # positions_table[i, j] = i / 10000 ** (2*j / D)
    positions_table = i / np.power(10000.0, 2.0 * j / size_of_token_embedding)
    pe = np.zeros((number_of_tokens, size_of_token_embedding), dtype=np.float64)
    pe[:, 0::2] = np.sin(positions_table[:, 0::2])
    pe[:, 1::2] = np.cos(positions_table[:, 1::2])
    return pe.astype(np.float32)


def make_pe_buffer(number_of_tokens: int, size_of_token_embedding: int,
                   is_input_normalized: bool) -> tuple[np.ndarray, float]:
    scaler = 1.0 if is_input_normalized else 255.0
    scaling_factor = 2.0 if is_input_normalized else 255.0 * 2.0
    pe = get_positional_encoding_table(number_of_tokens, size_of_token_embedding)
    # __transform_positional_encoding_tensor: (pe + 1) * scaler / 2
    pe = (pe + 1.0) * scaler / 2.0
    return pe.astype(np.float32), scaling_factor


# ---------------------------------------------------------------------------
# Pallas kernel: out = (x + pe) * (1/scaling_factor)
# ---------------------------------------------------------------------------
def _pe_add_kernel(x_ref, pe_ref, o_ref, *, inv_scaling: float):
    # x_ref : (TILE_B, TILE_C)   batch-rows x flattened (token, embedding) lanes
    # pe_ref: (1,      TILE_C)   rank-matched -> plain VPU sublane broadcast add
    o_ref[...] = (x_ref[...] + pe_ref[...]) * inv_scaling


# ~4 MiB x-tile: well past the measured HBM-roofline knee (512-row f32 tiles
# ~85%); 2x double-buffered (x + out) tiles + pe stay under the 32 MiB scoped
# VMEM limit on every generation (incl. v7x's 64 MiB physical VMEM).
_TARGET_TILE_BYTES = 4 * 1024 * 1024


def _choose_tiles(batch: int, cols: int, itemsize: int) -> tuple[int, int]:
    # Column tile: lane axis must stay a multiple of 128 (or the full extent).
    max_cols = max(128, _TARGET_TILE_BYTES // (8 * itemsize))
    if cols <= max_cols:
        tile_c = cols                                   # full extent (always legal)
    else:
        tile_c = max(128, (max_cols // 128) * 128)      # lane-dense split
    # Row tile: multiple of 8 (sublane alignment) or the full batch.
    max_rows = max(1, _TARGET_TILE_BYTES // (tile_c * itemsize))
    if batch <= max_rows:
        tile_b = batch                                  # full extent
    else:
        tile_b = max(8, (max_rows // 8) * 8)
    return tile_b, tile_c


def vision_positional_encoding(x: jax.Array, pe: jax.Array,
                               scaling_factor: float) -> jax.Array:
    """x: (B, N, D); pe: (N, D). Returns (x + pe) / scaling_factor, shape (B, N, D)."""
    B, N, D = x.shape
    assert pe.shape == (N, D)
    NC = N * D

    # Flatten (N, D) -> one lane axis: same memory layout (free reshape) and
    # gives unmasked, lane-dense stores whenever N*D is a multiple of 128
    # (e.g. the demo's 8*32=256), even when D alone is < 128.
    x2 = x.reshape(B, NC)
    pe2 = pe.astype(x.dtype).reshape(1, NC)

    itemsize = x.dtype.itemsize
    tile_b, tile_c = _choose_tiles(B, NC, itemsize)
    n_row_tiles = pl.cdiv(B, tile_b)
    n_col_tiles = pl.cdiv(NC, tile_c)

    # Grid ordered (col tiles, row tiles): the pe block index only depends on
    # the outer axis, so Pallas re-fetches pe only when the column tile
    # changes (n_col_tiles times total) instead of every grid step.
    grid = (n_col_tiles, n_row_tiles)

    # pe is a small read-only constant: when its block never changes across the
    # grid (single column tile), single-buffer it to free VMEM for bigger tiles.
    pe_pipeline = pl.Buffered(buffer_count=1) if n_col_tiles == 1 else None

    kernel = functools.partial(_pe_add_kernel, inv_scaling=1.0 / scaling_factor)
    out2 = pl.pallas_call(
        kernel,
        out_shape=jax.ShapeDtypeStruct((B, NC), x.dtype),
        grid_spec=pltpu.PrefetchScalarGridSpec(
            num_scalar_prefetch=0,
            grid=grid,
            in_specs=[
                pl.BlockSpec((tile_b, tile_c), lambda j, i: (i, j)),
                pl.BlockSpec((1, tile_c), lambda j, i: (0, j),
                             pipeline_mode=pe_pipeline),
            ],
            out_specs=pl.BlockSpec((tile_b, tile_c), lambda j, i: (i, j)),
        ),
        compiler_params=pltpu.CompilerParams(
            dimension_semantics=("parallel", "parallel"),
            vmem_limit_bytes=32 * 1024 * 1024,
        ),
        cost_estimate=pl.CostEstimate(
            flops=2 * B * NC,
            transcendentals=0,
            bytes_accessed=(2 * B * NC + NC) * itemsize,
        ),
    )(x2, pe2)
    return out2.reshape(B, N, D)


# TODO(synk): the largest remaining win for this op is fusing the add into the
# producer/consumer kernel (or running bf16 end-to-end); as a standalone kernel
# it is irreducibly HBM-bandwidth bound.


# ---------------------------------------------------------------------------
# Demo / correctness check
# ---------------------------------------------------------------------------
if __name__ == "__main__":
    key = jax.random.PRNGKey(0)

    # --- primary small shape (matches the module's (B, N, D) convention) ---
    batch_size, number_of_tokens, size_of_token_embedding = 2, 8, 32
    is_input_normalized = True

    pe_np, scaling_factor = make_pe_buffer(
        number_of_tokens, size_of_token_embedding, is_input_normalized)
    pe = jnp.asarray(pe_np)

    x = jax.random.uniform(
        key, (batch_size, number_of_tokens, size_of_token_embedding),
        dtype=jnp.float32)

    out = vision_positional_encoding(x, pe, scaling_factor)
    out = jax.block_until_ready(out)

    ref = (x + pe[None, :, :]) / scaling_factor
    np.testing.assert_allclose(np.asarray(out), np.asarray(ref),
                               rtol=1e-6, atol=1e-6)

    # --- second shape: exercises larger tiles and un-normalized scaling ---
    b2, n2, d2 = 16, 1024, 128
    pe2_np, sf2 = make_pe_buffer(n2, d2, False)
    pe2 = jnp.asarray(pe2_np)
    x2 = jax.random.uniform(jax.random.PRNGKey(0), (b2, n2, d2),
                            dtype=jnp.float32) * 255.0
    out2 = jax.block_until_ready(vision_positional_encoding(x2, pe2, sf2))
    ref2 = (x2 + pe2[None, :, :]) / sf2
    np.testing.assert_allclose(np.asarray(out2), np.asarray(ref2),
                               rtol=1e-6, atol=1e-6)

    print("KERNEL_OK")
</pallas_src>

<mosaic_0001>
module attributes {stable_mosaic.version = 11 : i64} {
  func.func @_pe_add_kernel(%arg0: i32, %arg1: i32, %arg2: memref<2x256xf32, #tpu.memory_space<vmem>>, %arg3: memref<1x256xf32, #tpu.memory_space<vmem>>, %arg4: memref<2x256xf32, #tpu.memory_space<vmem>>) attributes {dimension_semantics = [#tpu.dimension_semantics<parallel>, #tpu.dimension_semantics<parallel>], iteration_bounds = array<i64: 1, 1>, scalar_prefetch = 0 : i64, scratch_operands = 0 : i64, tpu.core_type = #tpu.core_type<tc>, window_params = [{transform_indices = @transform_0, window_bounds = array<i64: 2, 256>}, {pipeline_mode = #tpu.pipeline_mode<synchronous>, transform_indices = @transform_1, window_bounds = array<i64: 1, 256>}, {transform_indices = @transform_2, window_bounds = array<i64: 2, 256>}]} {
    %c0 = arith.constant 0 : index
    %c0_0 = arith.constant 0 : index
    %0 = vector.load %arg2[%c0, %c0_0] : memref<2x256xf32, #tpu.memory_space<vmem>>, vector<2x256xf32>
    %c0_1 = arith.constant 0 : index
    %c0_2 = arith.constant 0 : index
    %1 = vector.load %arg3[%c0_1, %c0_2] : memref<1x256xf32, #tpu.memory_space<vmem>>, vector<1x256xf32>
    %2 = vector.broadcast %1 : vector<1x256xf32> to vector<2x256xf32>
    %3 = arith.addf %0, %2 : vector<2x256xf32>
    %cst = arith.constant 5.000000e-01 : f32
    %4 = vector.broadcast %cst : f32 to vector<2x256xf32>
    %5 = arith.mulf %3, %4 : vector<2x256xf32>
    %c0_3 = arith.constant 0 : index
    %c0_4 = arith.constant 0 : index
    %6 = vector.load %arg4[%c0_3, %c0_4] : memref<2x256xf32, #tpu.memory_space<vmem>>, vector<2x256xf32>
    tpu.vector_store %arg4[%c0_3, %c0_4], %5 {strides = array<i32>} : memref<2x256xf32, #tpu.memory_space<vmem>>, vector<2x256xf32>,
    return
  }
  func.func @transform_0(%arg0: i32, %arg1: i32) -> (i32, i32) {
    %c0_i32 = arith.constant 0 : i32
    return %arg1, %arg0 : i32, i32
  }
  func.func @transform_1(%arg0: i32, %arg1: i32) -> (i32, i32) {
    %c0_i32 = arith.constant 0 : i32
    %c0_i32_0 = arith.constant 0 : i32
    return %c0_i32, %arg0 : i32, i32
  }
  func.func @transform_2(%arg0: i32, %arg1: i32) -> (i32, i32) {
    %c0_i32 = arith.constant 0 : i32
    return %arg1, %arg0 : i32, i32
  }
}

</mosaic_0001>

<llo_original>
// kernel: tpu_custom_call.1
$region0: #{tpu_custom_call.1}
  #allocation0 [shape = 'u32[]', space=smem, size = 0x4, offset = 0x4, fixed_abs, tag = 'smem constant byte address 0x4 - core index']
  #allocation1 [shape = 'u32[144,128]{1,0:T(1,128)}', space=vmem, size = 0x12000, scoped, tag = 'internal scratch']
  %s0 = inlined_call_operand.hbm [shape: f32[2,256], index: 0, kind: input, shape index: {}]
  %s1 = inlined_call_operand.hbm [shape: f32[1,256], index: 1, kind: input, shape index: {}]
  %s2 = inlined_call_operand.hbm [shape: f32[2,256], index: 2, kind: output, shape index: {}]
  %s3 = sld [smem:[#allocation0]]
  $region26: #{tpu_custom_call.1} parent=0
    _
  %s5 = ssub.s32 1, %s3
  %s6 = scalar_select 0, %s5, %s3
  $region1: #{tpu_custom_call.1} parent=0
    #allocation2 [shape = 'u8[2048]{0}', space=vmem, size = 0x800, scoped, tag = 'input window, operand 0, single buffered']
    #allocation3 [shape = 's32[1]{0}', space=sflag, size = 0x4, scoped, tag = 'scoped memory for tpu_custom_call.1']
    #allocation4 [shape = 's32[1]{0}', space=sflag, size = 0x4, scoped, tag = 'scoped memory for tpu_custom_call.1']
    #allocation5 [shape = 'u8[1024]{0}', space=vmem, size = 0x400, scoped, tag = 'input window, operand 1, single buffered']
    #allocation6 [shape = 's32[1]{0}', space=sflag, size = 0x4, scoped, tag = 'scoped memory for tpu_custom_call.1']
    #allocation7 [shape = 'u8[2048]{0}', space=vmem, size = 0x800, scoped, tag = 'output window, operand 0, single buffered']
    %7 = vsyncpa [#allocation3], 0
    %8 = vsyncpa [#allocation6], 0
    %9 = vsyncpa [#allocation4], 0
    // Predicated region
    $region2: #{tpu_custom_call.1} parent=1 // pred_check
      _
    $region3: #{tpu_custom_call.1} parent=1 // pred_check_branch
      %11 = sbr.rel (0) target = $region5
    $region4: #{tpu_custom_call.1} parent=1 // pred_region
      %s13 = ssub.s32 64, 64
      %14 = vsyncadd [#allocation3], %s13
      %s16 = sshll.u32 [#allocation2], 4
      %s17 = int_to_ptr.vmem [resolvable:$true] %s16
      %19 = dma.hbm_to_vmem [thread:$0]  %s0, 64, %s17, [#allocation3]
    $region5: #{tpu_custom_call.1} parent=1 // pred_fallthru
      _
    // Predicated region
    $region6: #{tpu_custom_call.1} parent=1 // pred_check
      _
    $region7: #{tpu_custom_call.1} parent=1 // pred_check_branch
      %21 = sbr.rel (0) target = $region9
    $region8: #{tpu_custom_call.1} parent=1 // pred_region
      %s23 = ssub.s32 32, 32
      %24 = vsyncadd [#allocation6], %s23
      %s26 = sshll.u32 [#allocation5], 4
      %s27 = int_to_ptr.vmem [resolvable:$true] %s26
      %29 = dma.hbm_to_vmem [thread:$0]  %s1, 32, %s27, [#allocation6]
    $region9: #{tpu_custom_call.1} parent=1 // pred_fallthru
      _
    // Predicated region
    $region10: #{tpu_custom_call.1} parent=1 // pred_check
      _
    $region11: #{tpu_custom_call.1} parent=1 // pred_check_branch
      %31 = sbr.rel (0) target = $region13
    $region12: #{tpu_custom_call.1} parent=1 // pred_region
      %32 = dma.done [#allocation3], 64
    $region13: #{tpu_custom_call.1} parent=1 // pred_fallthru
      _
    // Predicated region
    $region14: #{tpu_custom_call.1} parent=1 // pred_check
      _
    $region15: #{tpu_custom_call.1} parent=1 // pred_check_branch
      %34 = sbr.rel (0) target = $region17
    $region16: #{tpu_custom_call.1} parent=1 // pred_region
      %35 = dma.done [#allocation6], 32
    $region17: #{tpu_custom_call.1} parent=1 // pred_fallthru
      _
    %v36 = vld [vmem:[#allocation2] sm:$0xf]
    %v37 = vld [vmem:[#allocation5] sm:$0x3]
    %v39 = vlaneseq
    %v40 = vshrl.u32 %v39, 7
    %v41 = vsub.s32 0, %v40
    %v42 = vrot.slane %v37, %v41
    %v43 = vlaneseq
    %v44 = vshrl.u32 %v43, 7
    %v45 = vsub.s32 1, %v44
    %v46 = vrot.slane %v37, %v45
    %v47 = vcombine.low %v42, %v46
    %v49 = vunpack.c.l.s4 1983009808
    %v50 = vunpack.c.0.s8 %v49
    %v51 = vlaneseq
    %v52 = vshrl.u32 %v51, 7
    %v53 = vsub.s32 %v50, %v52
    %v54 = vrot.slane %v47, %v53
    %v56 = vadd.f32 %v36, %v54
    %v57 = vmul.f32 %v56, 0.5
    %58 = vst [vmem:[#allocation7] sm:$0xf] %v57
    // Predicated region
    $region18: #{tpu_custom_call.1} parent=1 // pred_check
      _
    $region19: #{tpu_custom_call.1} parent=1 // pred_check_branch
      %60 = sbr.rel (0) target = $region21
    $region20: #{tpu_custom_call.1} parent=1 // pred_region
      %s62 = ssub.s32 64, 64
      %63 = vsyncadd [#allocation4], %s62
      %s65 = sshll.u32 [#allocation7], 4
      %s66 = int_to_ptr.vmem [resolvable:$true] %s65
      %68 = dma.vmem_to_hbm [thread:$0]  %s66, 64, %s2, [#allocation4]
    $region21: #{tpu_custom_call.1} parent=1 // pred_fallthru
      _
    // Predicated region
    $region22: #{tpu_custom_call.1} parent=1 // pred_check
      _
    $region23: #{tpu_custom_call.1} parent=1 // pred_check_branch
      %70 = sbr.rel (0) target = $region25
    $region24: #{tpu_custom_call.1} parent=1 // pred_region
      %71 = dma.done [#allocation4], 64
    $region25: #{tpu_custom_call.1} parent=1 // pred_fallthru
      _
    %72 = vsyncpa [#allocation3], 1
    %73 = vsyncpa [#allocation6], 1
    %74 = vsyncpa [#allocation4], 1

</llo_original>
